<compile_context>
chip_gen: v7x
topology: tpu7x:2x2x1
jax: 0.10.0
libtpu: 0.0.40
codegen_flags: <defaults>
</compile_context>

<pallas_src>
import jax
import jax.numpy as jnp
from jax.experimental import pallas as pl
from jax.experimental.pallas import tpu as pltpu


BLOCK_M = 32  # default batch rows per grid step; M = BLOCK_M*S for the main GEMM


# ----------------------------------------------------------------------------
# Pallas kernel: seq2seq (pos-wise Linear+ReLU) -> masked mean -> feedforward
# ----------------------------------------------------------------------------
def feature_kernel(emb_ref, mask_ref, w1_ref, b1_ref, w2_ref, b2_ref, out_ref):
    block_m, seq, d = emb_ref.shape

    # seq2seq_encoder: one big position-wise GEMM + bias + ReLU (f32 accumulate).
    e = emb_ref[...].reshape(block_m * seq, d)                        # bf16, no-cost collapse
    h = jnp.dot(e, w1_ref[...], preferred_element_type=jnp.float32) + b1_ref[...]
    h = jnp.maximum(h, 0.0)                                           # (BM*S, D) f32

    # seq2vec_encoder: masked mean pooling.  Mask multiply (VPU, fused with the ReLU
    # epilogue) + sum over the sequence/sublane axis (XLU) -- no selector matmul.
    m = mask_ref[...]                                                 # (BM, S) f32 {0,1}
    masked = h.reshape(block_m, seq, d) * m[:, :, None]               # (BM, S, D) f32
    summed = jnp.sum(masked, axis=1)                                  # (BM, D) f32
    count = jnp.maximum(jnp.sum(m, axis=1, keepdims=True), 1e-6)      # exact f32 token count
    pooled = summed * pl.reciprocal(count, approx=True)               # EUP vrcp slot

    # dropout = None -> identity.  feedforward: Linear + ReLU (bf16 in, f32 accumulate).
    ff = jnp.dot(pooled.astype(jnp.bfloat16), w2_ref[...],
                 preferred_element_type=jnp.float32) + b2_ref[...]
    out_ref[...] = jnp.maximum(ff, 0.0)                               # (BM, H) lane-dense store


def _vmem_limit_bytes(block_m, s, d, h_dim):
    emb_bufs = 2 * block_m * s * d * 2              # double-buffered bf16 input tiles
    mask_bufs = 2 * block_m * s * 4                 # double-buffered f32 mask tiles
    out_bufs = 2 * block_m * h_dim * 4              # double-buffered f32 output tiles
    weights = (d * d + d * h_dim) * 2 + (d + h_dim) * 4   # single-buffered (Buffered(1))
    interm = 2 * block_m * s * d * 4                # f32 hidden activation + headroom
    total = emb_bufs + mask_bufs + out_bufs + weights + interm + (4 << 20)
    # Floor at 32 MiB (>= default scoped limits), cap at 64 MiB so v7x (64 MiB VMEM) fits.
    return int(min(max(total, 32 << 20), 64 << 20))


def feature_network_pallas(emb, mask_f32, w1, b1, w2, b2, block_m):
    b_pad, s, d = emb.shape
    h_dim = w2.shape[1]
    grid = (b_pad // block_m,)
    weight_mode = pl.Buffered(1)  # grid-invariant blocks: skip double buffering
    return pl.pallas_call(
        feature_kernel,
        out_shape=jax.ShapeDtypeStruct((b_pad, h_dim), jnp.float32),
        grid=grid,
        in_specs=[
            pl.BlockSpec((block_m, s, d), lambda i: (i, 0, 0)),       # embedded tokens (bf16)
            pl.BlockSpec((block_m, s), lambda i: (i, 0)),             # token mask (f32 0/1)
            pl.BlockSpec((d, d), lambda i: (0, 0), pipeline_mode=weight_mode),      # w1 (bf16)
            pl.BlockSpec((1, d), lambda i: (0, 0), pipeline_mode=weight_mode),      # b1 (f32)
            pl.BlockSpec((d, h_dim), lambda i: (0, 0), pipeline_mode=weight_mode),  # w2 (bf16)
            pl.BlockSpec((1, h_dim), lambda i: (0, 0), pipeline_mode=weight_mode),  # b2 (f32)
        ],
        out_specs=pl.BlockSpec((block_m, h_dim), lambda i: (i, 0)),
        compiler_params=pltpu.CompilerParams(
            dimension_semantics=("parallel",),                         # batch axis -> megacore
            vmem_limit_bytes=_vmem_limit_bytes(block_m, s, d, h_dim)),
    )(emb, mask_f32, w1, b1, w2, b2)


# ----------------------------------------------------------------------------
# Wrapper mirroring FeatureNetwork.forward mask/buffer handling
# ----------------------------------------------------------------------------
def _choose_block_m(batch, requested):
    # Keep the grid >= 2 steps when the batch allows it (so v7x's two TensorCores both
    # get work) and stay a multiple of 8 (sublane granularity of the (BM, S)/(BM, H) tiles).
    bm = min(requested, max(8, (batch + 1) // 2))
    return ((bm + 7) // 8) * 8


def feature_network_forward(x, buffer, params, block_m=BLOCK_M):
    # mask extraction exactly as in the PyTorch forward
    mask = buffer.get('mask')
    if mask is None:
        masks = []
        for _indexer_name, indexer_tensors in x.items():
            if 'mask' in indexer_tensors:
                masks.append(indexer_tensors['mask'].astype(jnp.bool_))
        mask = masks[0]
    buffer['mask'] = mask

    # text_field_embedder: bf16 embedding lookup (gather glue stays in plain JAX).
    # TODO(synk): fuse the gather into the kernel (scalar-prefetched token ids + manual
    # per-row DMA from the HBM-resident table) to avoid the (B, S, D) HBM round trip.
    token_ids = x['tokens']['tokens']
    embedded = params['embedding'][token_ids]                   # (B, S, D) bf16

    b, _s = token_ids.shape
    block_m = _choose_block_m(b, block_m)
    mask_f32 = mask.astype(jnp.float32)

    # pad batch to a multiple of block_m (padded rows are fully masked -> sliced off)
    b_pad = ((b + block_m - 1) // block_m) * block_m
    if b_pad != b:
        embedded = jnp.pad(embedded, ((0, b_pad - b), (0, 0), (0, 0)))
        mask_f32 = jnp.pad(mask_f32, ((0, b_pad - b), (0, 0)))

    out = feature_network_pallas(
        embedded, mask_f32,
        params['w1'], params['b1'], params['w2'], params['b2'],
        block_m=block_m)
    return out[:b]                                              # (B, H)


# ----------------------------------------------------------------------------
# Pure-JAX reference for correctness checking (same bf16/f32 mixed precision)
# ----------------------------------------------------------------------------
def feature_network_ref(x, params):
    mask = x['tokens']['mask'].astype(jnp.float32)              # (B, S)
    e = params['embedding'][x['tokens']['tokens']]              # (B, S, D) bf16
    h = jnp.einsum('bsd,de->bse', e, params['w1'],
                   preferred_element_type=jnp.float32) + params['b1']
    h = jnp.maximum(h, 0.0)
    summed = jnp.einsum('bs,bsd->bd', mask, h)                  # f32 masked sum (matches kernel)
    pooled = summed / jnp.maximum(mask.sum(axis=1, keepdims=True), 1e-6)
    ff = jnp.dot(pooled.astype(jnp.bfloat16), params['w2'],
                 preferred_element_type=jnp.float32) + params['b2']
    return jnp.maximum(ff, 0.0)


if __name__ == "__main__":
    B, S, D, H, V = 16, 8, 128, 128, 100   # D/H multiples of 128 -> lane-dense tiles

    key = jax.random.PRNGKey(0)
    k_emb, k_w1, k_b1, k_w2, k_b2, k_ids = jax.random.split(key, 6)

    params = {
        'embedding': (jax.random.normal(k_emb, (V, D), jnp.float32) * 0.1).astype(jnp.bfloat16),
        'w1': (jax.random.normal(k_w1, (D, D), jnp.float32) * 0.1).astype(jnp.bfloat16),
        'b1': jax.random.normal(k_b1, (1, D), jnp.float32) * 0.01,
        'w2': (jax.random.normal(k_w2, (D, H), jnp.float32) * 0.1).astype(jnp.bfloat16),
        'b2': jax.random.normal(k_b2, (1, H), jnp.float32) * 0.01,
    }

    token_ids = jax.random.randint(k_ids, (B, S), 0, V, dtype=jnp.int32)
    lengths = (jnp.arange(B) % S) + 1                 # 1..S valid tokens per row
    mask = jnp.arange(S)[None, :] < lengths[:, None]  # (B, S) bool with varied padding

    x = {'tokens': {'tokens': token_ids, 'mask': mask}}
    buffer = {}

    out = feature_network_forward(x, buffer, params)
    out = jax.block_until_ready(out)

    ref = feature_network_ref(x, params)
    assert out.shape == (B, H)
    max_err = jnp.max(jnp.abs(out - ref))
    assert jnp.allclose(out, ref, atol=2e-3, rtol=2e-3), f"mismatch vs reference (max |err|={max_err})"

    print("KERNEL_OK")
</pallas_src>

<mosaic_0001>
module attributes {stable_mosaic.version = 11 : i64} {
  func.func @feature_kernel(%arg0: i32, %arg1: memref<8x8x128xbf16, #tpu.memory_space<vmem>>, %arg2: memref<8x8xf32, #tpu.memory_space<vmem>>, %arg3: memref<128x128xbf16, #tpu.memory_space<vmem>>, %arg4: memref<1x128xf32, #tpu.memory_space<vmem>>, %arg5: memref<128x128xbf16, #tpu.memory_space<vmem>>, %arg6: memref<1x128xf32, #tpu.memory_space<vmem>>, %arg7: memref<8x128xf32, #tpu.memory_space<vmem>>) attributes {dimension_semantics = [#tpu.dimension_semantics<parallel>], iteration_bounds = array<i64: 2>, scalar_prefetch = 0 : i64, scratch_operands = 0 : i64, tpu.core_type = #tpu.core_type<tc>, window_params = [{transform_indices = @transform_0, window_bounds = array<i64: 8, 8, 128>}, {transform_indices = @transform_1, window_bounds = array<i64: 8, 8>}, {pipeline_mode = #tpu.pipeline_mode<synchronous>, transform_indices = @transform_2, window_bounds = array<i64: 128, 128>}, {pipeline_mode = #tpu.pipeline_mode<synchronous>, transform_indices = @transform_3, window_bounds = array<i64: 1, 128>}, {pipeline_mode = #tpu.pipeline_mode<synchronous>, transform_indices = @transform_4, window_bounds = array<i64: 128, 128>}, {pipeline_mode = #tpu.pipeline_mode<synchronous>, transform_indices = @transform_5, window_bounds = array<i64: 1, 128>}, {transform_indices = @transform_6, window_bounds = array<i64: 8, 128>}]} {
    %c0 = arith.constant 0 : index
    %c0_0 = arith.constant 0 : index
    %c0_1 = arith.constant 0 : index
    %0 = vector.load %arg1[%c0, %c0_0, %c0_1] : memref<8x8x128xbf16, #tpu.memory_space<vmem>>, vector<8x8x128xbf16>
    %1 = vector.shape_cast %0 : vector<8x8x128xbf16> to vector<64x128xbf16>
    %c0_2 = arith.constant 0 : index
    %c0_3 = arith.constant 0 : index
    %2 = vector.load %arg3[%c0_2, %c0_3] : memref<128x128xbf16, #tpu.memory_space<vmem>>, vector<128x128xbf16>
    %cst = arith.constant dense<0.000000e+00> : vector<64x128xf32>
    %3 = tpu.matmul %1, %2, %cst {dimension_numbers = #tpu.dot_dimension_numbers<[1], [0], [0], [1], [0, 0, 1, 1], [], []>} : vector<64x128xbf16>, vector<128x128xbf16>, vector<64x128xf32> -> vector<64x128xf32>
    %c0_4 = arith.constant 0 : index
    %c0_5 = arith.constant 0 : index
    %4 = vector.load %arg4[%c0_4, %c0_5] : memref<1x128xf32, #tpu.memory_space<vmem>>, vector<1x128xf32>
    %5 = vector.broadcast %4 : vector<1x128xf32> to vector<64x128xf32>
    %6 = arith.addf %3, %5 : vector<64x128xf32>
    %cst_6 = arith.constant 0.000000e+00 : f32
    %7 = vector.broadcast %cst_6 : f32 to vector<64x128xf32>
    %8 = arith.maximumf %6, %7 : vector<64x128xf32>
    %c0_7 = arith.constant 0 : index
    %c0_8 = arith.constant 0 : index
    %9 = vector.load %arg2[%c0_7, %c0_8] : memref<8x8xf32, #tpu.memory_space<vmem>>, vector<8x8xf32>
    %10 = vector.shape_cast %8 : vector<64x128xf32> to vector<8x8x128xf32>
    %11 = vector.shape_cast %9 : vector<8x8xf32> to vector<8x8x1xf32>
    %12 = vector.broadcast %11 : vector<8x8x1xf32> to vector<8x8x128xf32>
    %13 = arith.mulf %10, %12 : vector<8x8x128xf32>
    %cst_9 = arith.constant dense<0.000000e+00> : vector<8x128xf32>
    %14 = vector.multi_reduction <add>, %13, %cst_9 [1] : vector<8x8x128xf32> to vector<8x128xf32>
    %cst_10 = arith.constant dense<0.000000e+00> : vector<8xf32>
    %15 = vector.multi_reduction <add>, %9, %cst_10 [1] : vector<8x8xf32> to vector<8xf32>
    %16 = vector.shape_cast %15 : vector<8xf32> to vector<8x1xf32>
    %cst_11 = arith.constant 9.99999997E-7 : f32
    %17 = vector.broadcast %cst_11 : f32 to vector<8x1xf32>
    %18 = arith.maximumf %16, %17 : vector<8x1xf32>
    %19 = tpu.reciprocal %18 {approx = true} : vector<8x1xf32> -> vector<8x1xf32>
    %20 = vector.broadcast %19 : vector<8x1xf32> to vector<8x128xf32>
    %21 = arith.mulf %14, %20 : vector<8x128xf32>
    %22 = arith.truncf %21 : vector<8x128xf32> to vector<8x128xbf16>
    %c0_12 = arith.constant 0 : index
    %c0_13 = arith.constant 0 : index
    %23 = vector.load %arg5[%c0_12, %c0_13] : memref<128x128xbf16, #tpu.memory_space<vmem>>, vector<128x128xbf16>
    %cst_14 = arith.constant dense<0.000000e+00> : vector<8x128xf32>
    %24 = tpu.matmul %22, %23, %cst_14 {dimension_numbers = #tpu.dot_dimension_numbers<[1], [0], [0], [1], [0, 0, 1, 1], [], []>} : vector<8x128xbf16>, vector<128x128xbf16>, vector<8x128xf32> -> vector<8x128xf32>
    %c0_15 = arith.constant 0 : index
    %c0_16 = arith.constant 0 : index
    %25 = vector.load %arg6[%c0_15, %c0_16] : memref<1x128xf32, #tpu.memory_space<vmem>>, vector<1x128xf32>
    %26 = vector.broadcast %25 : vector<1x128xf32> to vector<8x128xf32>
    %27 = arith.addf %24, %26 : vector<8x128xf32>
    %cst_17 = arith.constant 0.000000e+00 : f32
    %28 = vector.broadcast %cst_17 : f32 to vector<8x128xf32>
    %29 = arith.maximumf %27, %28 : vector<8x128xf32>
    %c0_18 = arith.constant 0 : index
    %c0_19 = arith.constant 0 : index
    %30 = vector.load %arg7[%c0_18, %c0_19] : memref<8x128xf32, #tpu.memory_space<vmem>>, vector<8x128xf32>
    tpu.vector_store %arg7[%c0_18, %c0_19], %29 {strides = array<i32>} : memref<8x128xf32, #tpu.memory_space<vmem>>, vector<8x128xf32>,
    return
  }
  func.func @transform_0(%arg0: i32) -> (i32, i32, i32) {
    %c0_i32 = arith.constant 0 : i32
    %c0_i32_0 = arith.constant 0 : i32
    %c0_i32_1 = arith.constant 0 : i32
    return %arg0, %c0_i32, %c0_i32_0 : i32, i32, i32
  }
  func.func @transform_1(%arg0: i32) -> (i32, i32) {
    %c0_i32 = arith.constant 0 : i32
    %c0_i32_0 = arith.constant 0 : i32
    return %arg0, %c0_i32 : i32, i32
  }
  func.func @transform_2(%arg0: i32) -> (i32, i32) {
    %c0_i32 = arith.constant 0 : i32
    %c0_i32_0 = arith.constant 0 : i32
    %c0_i32_1 = arith.constant 0 : i32
    return %c0_i32, %c0_i32_0 : i32, i32
  }
  func.func @transform_3(%arg0: i32) -> (i32, i32) {
    %c0_i32 = arith.constant 0 : i32
    %c0_i32_0 = arith.constant 0 : i32
    %c0_i32_1 = arith.constant 0 : i32
    return %c0_i32, %c0_i32_0 : i32, i32
  }
  func.func @transform_4(%arg0: i32) -> (i32, i32) {
    %c0_i32 = arith.constant 0 : i32
    %c0_i32_0 = arith.constant 0 : i32
    %c0_i32_1 = arith.constant 0 : i32
    return %c0_i32, %c0_i32_0 : i32, i32
  }
  func.func @transform_5(%arg0: i32) -> (i32, i32) {
    %c0_i32 = arith.constant 0 : i32
    %c0_i32_0 = arith.constant 0 : i32
    %c0_i32_1 = arith.constant 0 : i32
    return %c0_i32, %c0_i32_0 : i32, i32
  }
  func.func @transform_6(%arg0: i32) -> (i32, i32) {
    %c0_i32 = arith.constant 0 : i32
    %c0_i32_0 = arith.constant 0 : i32
    return %arg0, %c0_i32 : i32, i32
  }
}

</mosaic_0001>

<llo_original>
// kernel: tpu_custom_call.1
$region0: #{tpu_custom_call.1}
  #allocation0 [shape = 'u32[]', space=smem, size = 0x4, offset = 0x4, fixed_abs, tag = 'smem constant byte address 0x4 - core index']
  #allocation1 [shape = 'u32[144,128]{1,0:T(1,128)}', space=vmem, size = 0x12000, scoped, tag = 'internal scratch']
  %s0 = inlined_call_operand.hbm [shape: bf16[16,8,128], index: 0, kind: input, shape index: {}]
  %s1 = inlined_call_operand.vmem [shape: f32[16,8], index: 1, kind: input, shape index: {}]
  %s2 = inlined_call_operand.hbm [shape: bf16[128,128], index: 2, kind: input, shape index: {}]
  %s3 = inlined_call_operand.vmem [shape: f32[1,128], index: 3, kind: input, shape index: {}]
  %s4 = inlined_call_operand.hbm [shape: bf16[128,128], index: 4, kind: input, shape index: {}]
  %s5 = inlined_call_operand.vmem [shape: f32[1,128], index: 5, kind: input, shape index: {}]
  %s6 = inlined_call_operand.hbm [shape: f32[16,128], index: 6, kind: output, shape index: {}]
  %s7 = sld [smem:[#allocation0]]
  $region69: #{tpu_custom_call.1} parent=0
    _
  %s9 = ssub.s32 1, %s7
  %s10 = scalar_select 0, %s9, %s7
  $region1: #{tpu_custom_call.1} parent=0
    #allocation2 [shape = 'u8[32768]{0}', space=vmem, size = 0x8000, scoped, tag = 'input window, operand 0']
    #allocation3 [shape = 's32[2]{0}', space=sflag, size = 0x8, scoped, tag = 'scoped memory for tpu_custom_call.1']
    #allocation4 [shape = 's32[2]{0}', space=sflag, size = 0x8, scoped, tag = 'scoped memory for tpu_custom_call.1']
    #allocation5 [shape = 'u8[32768]{0}', space=vmem, size = 0x8000, scoped, tag = 'input window, operand 2, single buffered']
    #allocation6 [shape = 's32[1]{0}', space=sflag, size = 0x4, scoped, tag = 'scoped memory for tpu_custom_call.1']
    #allocation7 [shape = 'u8[32768]{0}', space=vmem, size = 0x8000, scoped, tag = 'input window, operand 4, single buffered']
    #allocation8 [shape = 'u8[8192]{0}', space=vmem, size = 0x2000, scoped, tag = 'output window, operand 0']
    %11 = vsyncpa [#allocation3], 0
    %s12 = scalar_lea.sflag [#allocation3], 1
    %13 = vsyncpa %s12, 0
    %14 = vsyncpa [#allocation6], 0
    %15 = vsyncpa [#allocation4], 0
    %s16 = scalar_lea.sflag [#allocation4], 1
    %17 = vsyncpa %s16, 0
    loop: start=0, step=1, limit=4
    $region2: #{tpu_custom_call.1} parent=1 // loop_pre_header
      _
    $region3: #{tpu_custom_call.1} parent=1 // loop_header
      %s19 = sphi 0, %s23
      %p20 = scmp.ge.s32.totalorder %s19, 4
      %s29 = sphi 0, %s31
      %s32 = sphi 0, %s29
      %s33 = sphi 0, %s32
      %s49 = sphi 0, %s33
      %s55 = sphi 0, %s57
      %s58 = sphi 0, %s55
      %s59 = sphi 0, %s58
      %s75 = sphi 0, %s59
      %s79 = sphi 0, %s79
      %s81 = sphi 0, %s79
      %s82 = sphi 0, %s81
      %s96 = sphi 0, %s82
      %s100 = sphi 0, %s100
      %s102 = sphi 0, %s100
      %s103 = sphi 0, %s102
      %s117 = sphi 0, %s103
      %s121 = sphi 0, %s121
      %s123 = sphi 0, %s121
      %s124 = sphi 0, %s123
      %s138 = sphi 0, %s124
      %s142 = sphi 0, %s142
      %s144 = sphi 0, %s142
      %s145 = sphi 0, %s144
      %s159 = sphi 0, %s145
      %s165 = sphi 0, %s167
      %s168 = sphi 0, %s165
      %s169 = sphi 0, %s168
      %s185 = sphi 0, %s169
    $region4: #{tpu_custom_call.1} parent=1 // loop_header_branch
      %22 = sbr.rel (%p20) target = $region8
    $region5: #{tpu_custom_call.1} parent=1 // loop_body
      %s24 = ssub.s32 %s19, 1
      %s25 = ssub.s32 %s19, 2
      %s26 = sadd.s32 %s19, 1
      %s27 = ssub.s32 %s19, %s26
      %p28 = scmp.eq.s32.totalorder %s27, 0
      %s30 = sadd.s32 %s29, 1
      %s31 = scalar_select %p28, %s29, %s30
      %p34 = pneg %p28
      %p35 = scmp.eq.s32.totalorder %s19, 1
      %p36 = por %p34, %p35
      %p37 = scmp.ne.s32.totalorder %s29, %s32
      %p38 = scmp.eq.s32.totalorder %s19, 0
      %p39 = por %p37, %p38
      %p40 = scmp.ne.s32.totalorder %s29, %s32
      %p41 = scmp.eq.s32.totalorder %s24, 1
      %p42 = por %p40, %p41
      %p43 = scmp.ne.s32.totalorder %s32, %s33
      %p44 = scmp.eq.s32.totalorder %s24, 0
      %p45 = por %p43, %p44
      %p46 = scmp.ne.s32.totalorder %s32, %s33
      %p47 = scmp.eq.s32.totalorder %s25, 1
      %p48 = por %p46, %p47
      %p50 = scmp.ne.s32.totalorder %s33, %s49
      %p51 = scmp.eq.s32.totalorder %s25, 0
      %p52 = por %p50, %p51
      %s53 = ssub.s32 %s19, %s26
      %p54 = scmp.eq.s32.totalorder %s53, 0
      %s56 = sadd.s32 %s55, 1
      %s57 = scalar_select %p54, %s55, %s56
      %p60 = pneg %p54
      %p61 = scmp.eq.s32.totalorder %s19, 1
      %p62 = por %p60, %p61
      %p63 = scmp.ne.s32.totalorder %s55, %s58
      %p64 = scmp.eq.s32.totalorder %s19, 0
      %p65 = por %p63, %p64
      %p66 = scmp.ne.s32.totalorder %s55, %s58
      %p67 = scmp.eq.s32.totalorder %s24, 1
      %p68 = por %p66, %p67
      %p69 = scmp.ne.s32.totalorder %s58, %s59
      %p70 = scmp.eq.s32.totalorder %s24, 0
      %p71 = por %p69, %p70
      %p72 = scmp.ne.s32.totalorder %s58, %s59
      %p73 = scmp.eq.s32.totalorder %s25, 1
      %p74 = por %p72, %p73
      %p76 = scmp.ne.s32.totalorder %s59, %s75
      %p77 = scmp.eq.s32.totalorder %s25, 0
      %p78 = por %p76, %p77
      %s80 = sadd.s32 %s79, 1
      %p83 = scmp.eq.s32.totalorder %s19, 1
      %p84 = scmp.ne.s32.totalorder %s79, %s81
      %p85 = scmp.eq.s32.totalorder %s19, 0
      %p86 = por %p84, %p85
      %p87 = scmp.ne.s32.totalorder %s79, %s81
      %p88 = scmp.eq.s32.totalorder %s24, 1
      %p89 = por %p87, %p88
      %p90 = scmp.ne.s32.totalorder %s81, %s82
      %p91 = scmp.eq.s32.totalorder %s24, 0
      %p92 = por %p90, %p91
      %p93 = scmp.ne.s32.totalorder %s81, %s82
      %p94 = scmp.eq.s32.totalorder %s25, 1
      %p95 = por %p93, %p94
      %p97 = scmp.ne.s32.totalorder %s82, %s96
      %p98 = scmp.eq.s32.totalorder %s25, 0
      %p99 = por %p97, %p98
      %s101 = sadd.s32 %s100, 1
      %p104 = scmp.eq.s32.totalorder %s19, 1
      %p105 = scmp.ne.s32.totalorder %s100, %s102
      %p106 = scmp.eq.s32.totalorder %s19, 0
      %p107 = por %p105, %p106
      %p108 = scmp.ne.s32.totalorder %s100, %s102
      %p109 = scmp.eq.s32.totalorder %s24, 1
      %p110 = por %p108, %p109
      %p111 = scmp.ne.s32.totalorder %s102, %s103
      %p112 = scmp.eq.s32.totalorder %s24, 0
      %p113 = por %p111, %p112
      %p114 = scmp.ne.s32.totalorder %s102, %s103
      %p115 = scmp.eq.s32.totalorder %s25, 1
      %p116 = por %p114, %p115
      %p118 = scmp.ne.s32.totalorder %s103, %s117
      %p119 = scmp.eq.s32.totalorder %s25, 0
      %p120 = por %p118, %p119
      %s122 = sadd.s32 %s121, 1
      %p125 = scmp.eq.s32.totalorder %s19, 1
      %p126 = scmp.ne.s32.totalorder %s121, %s123
      %p127 = scmp.eq.s32.totalorder %s19, 0
      %p128 = por %p126, %p127
      %p129 = scmp.ne.s32.totalorder %s121, %s123
      %p130 = scmp.eq.s32.totalorder %s24, 1
      %p131 = por %p129, %p130
      %p132 = scmp.ne.s32.totalorder %s123, %s124
      %p133 = scmp.eq.s32.totalorder %s24, 0
      %p134 = por %p132, %p133
      %p135 = scmp.ne.s32.totalorder %s123, %s124
      %p136 = scmp.eq.s32.totalorder %s25, 1
      %p137 = por %p135, %p136
      %p139 = scmp.ne.s32.totalorder %s124, %s138
      %p140 = scmp.eq.s32.totalorder %s25, 0
      %p141 = por %p139, %p140
      %s143 = sadd.s32 %s142, 1
      %p146 = scmp.eq.s32.totalorder %s19, 1
      %p147 = scmp.ne.s32.totalorder %s142, %s144
      %p148 = scmp.eq.s32.totalorder %s19, 0
      %p149 = por %p147, %p148
      %p150 = scmp.ne.s32.totalorder %s142, %s144
      %p151 = scmp.eq.s32.totalorder %s24, 1
      %p152 = por %p150, %p151
      %p153 = scmp.ne.s32.totalorder %s144, %s145
      %p154 = scmp.eq.s32.totalorder %s24, 0
      %p155 = por %p153, %p154
      %p156 = scmp.ne.s32.totalorder %s144, %s145
      %p157 = scmp.eq.s32.totalorder %s25, 1
      %p158 = por %p156, %p157
      %p160 = scmp.ne.s32.totalorder %s145, %s159
      %p161 = scmp.eq.s32.totalorder %s25, 0
      %p162 = por %p160, %p161
      %s163 = ssub.s32 %s19, %s26
      %p164 = scmp.eq.s32.totalorder %s163, 0
      %s166 = sadd.s32 %s165, 1
      %s167 = scalar_select %p164, %s165, %s166
      %p170 = pneg %p164
      %p171 = scmp.eq.s32.totalorder %s19, 1
      %p172 = por %p170, %p171
      %p173 = scmp.ne.s32.totalorder %s165, %s168
      %p174 = scmp.eq.s32.totalorder %s19, 0
      %p175 = por %p173, %p174
      %p176 = scmp.ne.s32.totalorder %s165, %s168
      %p177 = scmp.eq.s32.totalorder %s24, 1
      %p178 = por %p176, %p177
      %p179 = scmp.ne.s32.totalorder %s168, %s169
      %p180 = scmp.eq.s32.totalorder %s24, 0
      %p181 = por %p179, %p180
      %p182 = scmp.ne.s32.totalorder %s168, %s169
      %p183 = scmp.eq.s32.totalorder %s25, 1
      %p184 = por %p182, %p183
      %p186 = scmp.ne.s32.totalorder %s169, %s185
      %p187 = scmp.eq.s32.totalorder %s25, 0
      %p188 = por %p186, %p187
      %p189 = scmp.le.s32.totalorder 1, %s19
      %p190 = scmp.lt.s32.totalorder %s19, 3
      %p191 = pnand %p189, %p190
      %p192 = pneg %p191
      // Predicated region
      $region9: #{tpu_custom_call.1} parent=5 // pred_check
        _
      $region10: #{tpu_custom_call.1} parent=5 // pred_check_branch
        %194 = sbr.rel (%p191) target = $region12
      $region11: #{tpu_custom_call.1} parent=5 // pred_region
        %s195 = ssub.s32 %s19, 1
        // Predicated region
        $region13: #{tpu_custom_call.1} parent=11 // pred_check
          %p196 = pneg %p92
        $region14: #{tpu_custom_call.1} parent=11 // pred_check_branch
          %198 = sbr.rel (%p196) target = $region16
        $region15: #{tpu_custom_call.1} parent=11 // pred_region
          %s200 = ssub.s32 1024, 1024
          %201 = vsyncadd [#allocation6], %s200
          %s202 = sshll.u32 [#allocation5], 4
          %s203 = int_to_ptr.vmem [resolvable:$true] %s202
          %208 = dma.hbm_to_vmem [thread:$0]  %s2, 1024, %s203, [#allocation6], 64, 64, 4
        $region16: #{tpu_custom_call.1} parent=11 // pred_fallthru
          _
        // Predicated region
        $region17: #{tpu_custom_call.1} parent=11 // pred_check
          %p209 = pneg %p113
        $region18: #{tpu_custom_call.1} parent=11 // pred_check_branch
          %211 = sbr.rel (%p209) target = $region20
        $region19: #{tpu_custom_call.1} parent=11 // pred_region
          _
        $region20: #{tpu_custom_call.1} parent=11 // pred_fallthru
          _
        // Predicated region
        $region21: #{tpu_custom_call.1} parent=11 // pred_check
          %p212 = pneg %p134
        $region22: #{tpu_custom_call.1} parent=11 // pred_check_branch
          %214 = sbr.rel (%p212) target = $region24
        $region23: #{tpu_custom_call.1} parent=11 // pred_region
          %s216 = ssub.s32 1024, 1024
          %217 = vsyncadd [#allocation6], %s216
          %s218 = sshll.u32 [#allocation7], 4
          %s219 = int_to_ptr.vmem [resolvable:$true] %s218
          %224 = dma.hbm_to_vmem [thread:$0]  %s4, 1024, %s219, [#allocation6], 64, 64, 4
        $region24: #{tpu_custom_call.1} parent=11 // pred_fallthru
          _
        // Predicated region
        $region25: #{tpu_custom_call.1} parent=11 // pred_check
          %p225 = pneg %p155
        $region26: #{tpu_custom_call.1} parent=11 // pred_check_branch
          %227 = sbr.rel (%p225) target = $region28
        $region27: #{tpu_custom_call.1} parent=11 // pred_region
          _
        $region28: #{tpu_custom_call.1} parent=11 // pred_fallthru
          _
      $region12: #{tpu_custom_call.1} parent=5 // pred_fallthru
        _
      %p228 = scmp.lt.s32.totalorder %s19, 2
      // Predicated region
      $region29: #{tpu_custom_call.1} parent=5 // pred_check
        %p229 = pneg %p228
      $region30: #{tpu_custom_call.1} parent=5 // pred_check_branch
        %231 = sbr.rel (%p229) target = $region32
      $region31: #{tpu_custom_call.1} parent=5 // pred_region
        // Predicated region
        $region33: #{tpu_custom_call.1} parent=31 // pred_check
          %p232 = pneg %p39
        $region34: #{tpu_custom_call.1} parent=31 // pred_check_branch
          %234 = sbr.rel (%p232) target = $region36
        $region35: #{tpu_custom_call.1} parent=31 // pred_region
          %s235 = sand.u32 %s29, 1
          %s236 = scalar_lea.sflag [#allocation3], %s235
          %s237 = sand.u32 %s29, 1
          %s238 = smul.addr %s237, 32
          %s239 = scalar_lea.vmem [#allocation2], %s238
          %s240 = smul.u32 8, %s19
          %s242 = ssub.s32 512, 512
          %243 = vsyncadd %s236, %s242
          %s244 = smul.addr %s240, 64
          %s245 = scalar_lea.hbm %s0, %s244
          %s246 = sshll.u32 %s239, 4
          %s247 = int_to_ptr.vmem [resolvable:$true] %s246
          %252 = dma.hbm_to_vmem [thread:$0]  %s245, 512, %s247, %s236, 64, 64, 4
        $region36: #{tpu_custom_call.1} parent=31 // pred_fallthru
          _
        // Predicated region
        $region37: #{tpu_custom_call.1} parent=31 // pred_check
          %p253 = pneg %p65
        $region38: #{tpu_custom_call.1} parent=31 // pred_check_branch
          %255 = sbr.rel (%p253) target = $region40
        $region39: #{tpu_custom_call.1} parent=31 // pred_region
          %p256 = scmp.lt.s32.totalorder %s19, 1
          %s257 = scalar_select %p256, %s19, 1
          %s258 = smul.addr %s257, 8
          %s259 = scalar_lea.vmem %s1, %s258
        $region40: #{tpu_custom_call.1} parent=31 // pred_fallthru
          _
      $region32: #{tpu_custom_call.1} parent=5 // pred_fallthru
        _
      %p260 = scmp.le.s32.totalorder 1, %s19
      %p261 = scmp.lt.s32.totalorder %s19, 3
      %p262 = pnand %p260, %p261
      %p263 = pneg %p262
      // Predicated region
      $region41: #{tpu_custom_call.1} parent=5 // pred_check
        _
      $region42: #{tpu_custom_call.1} parent=5 // pred_check_branch
        %265 = sbr.rel (%p262) target = $region44
      $region43: #{tpu_custom_call.1} parent=5 // pred_region
        %s266 = ssub.s32 %s19, 1
        %s267 = sand.u32 %s32, 1
        %s268 = scalar_lea.sflag [#allocation3], %s267
        %s269 = sand.u32 %s32, 1
        %s270 = smul.addr %s269, 32
        %s271 = scalar_lea.vmem [#allocation2], %s270
        // Predicated region
        $region45: #{tpu_custom_call.1} parent=43 // pred_check
          %p272 = pneg %p45
        $region46: #{tpu_custom_call.1} parent=43 // pred_check_branch
          %274 = sbr.rel (%p272) target = $region48
        $region47: #{tpu_custom_call.1} parent=43 // pred_region
          %275 = dma.done %s268, 512
        $region48: #{tpu_custom_call.1} parent=43 // pred_fallthru
          _
        // Predicated region
        $region49: #{tpu_custom_call.1} parent=43 // pred_check
          %p276 = pneg %p92
        $region50: #{tpu_custom_call.1} parent=43 // pred_check_branch
          %278 = sbr.rel (%p276) target = $region52
        $region51: #{tpu_custom_call.1} parent=43 // pred_region
          %279 = dma.done [#allocation6], 1024
        $region52: #{tpu_custom_call.1} parent=43 // pred_fallthru
          _
        // Predicated region
        $region53: #{tpu_custom_call.1} parent=43 // pred_check
          %p280 = pneg %p134
        $region54: #{tpu_custom_call.1} parent=43 // pred_check_branch
          %282 = sbr.rel (%p280) target = $region56
        $region55: #{tpu_custom_call.1} parent=43 // pred_region
          %283 = dma.done [#allocation6], 1024
        $region56: #{tpu_custom_call.1} parent=43 // pred_fallthru
          _
        %s284 = sand.u32 %s32, 1
        %s285 = scalar_lea.sflag [#allocation3], %s284
        %s286 = sand.u32 %s32, 1
        %s287 = smul.addr %s286, 32
        %s288 = scalar_lea.vmem [#allocation2], %s287
        %p289 = pneg %p45
        %p290 = pneg %p42
        %p291 = scmp.lt.s32.totalorder %s24, 1
        %s292 = scalar_select %p291, %s24, 1
        %s293 = smul.addr %s292, 8
        %s294 = scalar_lea.vmem %s1, %s293
        %p295 = pneg %p71
        %p296 = pneg %p68
        %p297 = pneg %p92
        %p298 = pneg %p89
        %p299 = pneg %p113
        %p300 = pneg %p110
        %p301 = pneg %p134
        %p302 = pneg %p131
        %p303 = pneg %p155
        %p304 = pneg %p152
        %p305 = pneg %p181
        %p306 = pneg %p178
        %s307 = sand.u32 %s168, 1
        %s308 = scalar_lea.sflag [#allocation4], %s307
        %s309 = sand.u32 %s168, 1
        %s310 = smul.addr %s309, 8
        %s311 = scalar_lea.vmem [#allocation8], %s310
        %s312 = smul.u32 8, %s24
        %p313 = scmp.lt.s32.totalorder %s24, 1
        %s314 = scalar_select %p313, %s24, 1
        %s315 = smul.addr %s314, 8
        %s316 = scalar_lea.vmem %s1, %s315
        %v318 = vld [vmem:[%s271] sm:$0xf]
        %v319 = vld [vmem:[%s271 + $0x4] sm:$0xf]
        %v320 = vld [vmem:[%s271 + $0x8] sm:$0xf]
        %v321 = vld [vmem:[%s271 + $0xc] sm:$0xf]
        %v322 = vld [vmem:[%s271 + $0x10] sm:$0xf]
        %v323 = vld [vmem:[%s271 + $0x14] sm:$0xf]
        %v324 = vld [vmem:[%s271 + $0x18] sm:$0xf]
        %v325 = vld [vmem:[%s271 + $0x1c] sm:$0xf]
        %v326 = vld [vmem:[#allocation5] sm:$0xf]
        %v327 = vld [vmem:[#allocation5 + $0x4] sm:$0xf]
        %v328 = vld [vmem:[#allocation5 + $0x8] sm:$0xf]
        %v329 = vld [vmem:[#allocation5 + $0xc] sm:$0xf]
        %v330 = vld [vmem:[#allocation5 + $0x10] sm:$0xf]
        %v331 = vld [vmem:[#allocation5 + $0x14] sm:$0xf]
        %v332 = vld [vmem:[#allocation5 + $0x18] sm:$0xf]
        %v333 = vld [vmem:[#allocation5 + $0x1c] sm:$0xf]
        %v334 = vld [vmem:[#allocation5 + $0x20] sm:$0xf]
        %v335 = vld [vmem:[#allocation5 + $0x24] sm:$0xf]
        %v336 = vld [vmem:[#allocation5 + $0x28] sm:$0xf]
        %v337 = vld [vmem:[#allocation5 + $0x2c] sm:$0xf]
        %v338 = vld [vmem:[#allocation5 + $0x30] sm:$0xf]
        %v339 = vld [vmem:[#allocation5 + $0x34] sm:$0xf]
        %v340 = vld [vmem:[#allocation5 + $0x38] sm:$0xf]
        %v341 = vld [vmem:[#allocation5 + $0x3c] sm:$0xf]
        %v342 = vld [vmem:[%s3] sm:$0x1]
        %v344 = vlaneseq
        %v345 = vshrl.u32 %v344, 7
        %v346 = vsub.s32 0, %v345
        %v347 = vrot.slane %v342, %v346
        %v357 = vunpack.c.l.b16 %v318
        %v358 = vunpack.c.l.b16 %v319
        %v359 = vunpack.c.l.b16 %v320
        %v360 = vunpack.c.l.b16 %v321
        %v361 = vunpack.c.l.b16 %v322
        %v362 = vunpack.c.l.b16 %v323
        %v363 = vunpack.c.l.b16 %v324
        %v364 = vunpack.c.l.b16 %v325
        %v365 = vpack.c.b16 %v358, %v357
        %v366 = vpack.c.b16 %v360, %v359
        %v367 = vpack.c.b16 %v362, %v361
        %v368 = vpack.c.b16 %v364, %v363
        %v389 = vunpack.c.l.b16 %v326
        %v390 = vunpack.c.l.b16 %v327
        %v391 = vunpack.c.l.b16 %v328
        %v392 = vunpack.c.l.b16 %v329
        %v393 = vunpack.c.l.b16 %v330
        %v394 = vunpack.c.l.b16 %v331
        %v395 = vunpack.c.l.b16 %v332
        %v396 = vunpack.c.l.b16 %v333
        %v397 = vunpack.c.l.b16 %v334
        %v398 = vunpack.c.l.b16 %v335
        %v399 = vunpack.c.l.b16 %v336
        %v400 = vunpack.c.l.b16 %v337
        %v401 = vunpack.c.l.b16 %v338
        %v402 = vunpack.c.l.b16 %v339
        %v403 = vunpack.c.l.b16 %v340
        %v404 = vunpack.c.l.b16 %v341
        %v405 = vpack.c.b16 %v390, %v389
        %v406 = vpack.c.b16 %v392, %v391
        %v407 = vpack.c.b16 %v394, %v393
        %v408 = vpack.c.b16 %v396, %v395
        %v409 = vpack.c.b16 %v398, %v397
        %v410 = vpack.c.b16 %v400, %v399
        %v411 = vpack.c.b16 %v402, %v401
        %v412 = vpack.c.b16 %v404, %v403
        %421 = vmatprep.subr.bf16.mxu0 0
        %422 = vmatpush1.bf16.msra.mxu0 %v405
        %423 = vmatprep.subr.bf16.mxu0 0
        %424 = vmatpush1.bf16.msra.mxu0 %v406
        %425 = vmatprep.subr.bf16.mxu0 0
        %426 = vmatpush1.bf16.msra.mxu0 %v407
        %427 = vmatprep.subr.bf16.mxu0 0
        %428 = vmatpush1.bf16.msra.mxu0 %v408
        %429 = vmatprep.subr.bf16.mxu0 0
        %430 = vmatpush1.bf16.msra.mxu0 %v409
        %431 = vmatprep.subr.bf16.mxu0 0
        %432 = vmatpush1.bf16.msra.mxu0 %v410
        %433 = vmatprep.subr.bf16.mxu0 0
        %434 = vmatpush1.bf16.msra.mxu0 %v411
        %435 = vmatprep.subr.bf16.mxu0 0
        %436 = vmatpush1.bf16.msra.mxu0 %v412
        %437 = vmatprep.subr.bf16.mxu0 0
        %438 = vmatpush1.bf16.msra.mxu0 0
        %439 = vmatprep.subr.bf16.mxu0 0
        %440 = vmatpush1.bf16.msra.mxu0 0
        %441 = vmatprep.subr.bf16.mxu0 0
        %442 = vmatpush1.bf16.msra.mxu0 0
        %443 = vmatprep.subr.bf16.mxu0 0
        %444 = vmatpush1.bf16.msra.mxu0 0
        %445 = vmatprep.subr.bf16.mxu0 0
        %446 = vmatpush1.bf16.msra.mxu0 0
        %447 = vmatprep.subr.bf16.mxu0 0
        %448 = vmatpush1.bf16.msra.mxu0 0
        %449 = vmatprep.subr.bf16.mxu0 0
        %450 = vmatpush1.bf16.msra.mxu0 0
        %451 = vmatprep.subr.bf16.mxu0 0
        %452 = vmatpush1.bf16.msra.mxu0 0
        %453 = vmatprep.mubr.bf16.mxu0 0
        %454 = vmatmul.mubr.bf16.gmra.mrb[0].mxu0 %v365
        %v455 = vpop.f32.mrb[0].mxu0
        %v456 = vadd.f32 %v347, %v455
        %v457 = vpop.f32.mrb[0].mxu0
        %v458 = vpop.f32.mrb[0].mxu0
        %v459 = vadd.f32 %v347, %v458
        %v460 = vpop.f32.mrb[0].mxu0
        %461 = vmatprep.mubr.bf16.mxu0 0
        %462 = vmatmul.mubr.bf16.gmra.mrb[0].mxu0 %v366
        %v463 = vpop.f32.mrb[0].mxu0
        %v464 = vadd.f32 %v347, %v463
        %v465 = vpop.f32.mrb[0].mxu0
        %v466 = vpop.f32.mrb[0].mxu0
        %v467 = vadd.f32 %v347, %v466
        %v468 = vpop.f32.mrb[0].mxu0
        %469 = vmatprep.mubr.bf16.mxu0 0
        %470 = vmatmul.mubr.bf16.gmra.mrb[0].mxu0 %v367
        %v471 = vpop.f32.mrb[0].mxu0
        %v472 = vadd.f32 %v347, %v471
        %v473 = vpop.f32.mrb[0].mxu0
        %v474 = vpop.f32.mrb[0].mxu0
        %v475 = vadd.f32 %v347, %v474
        %v476 = vpop.f32.mrb[0].mxu0
        %477 = vmatprep.mubr.bf16.mxu0 0
        %478 = vmatmul.mubr.bf16.gmra.mrb[0].mxu0 %v368
        %v479 = vpop.f32.mrb[0].mxu0
        %v480 = vadd.f32 %v347, %v479
        %v481 = vpop.f32.mrb[0].mxu0
        %v482 = vpop.f32.mrb[0].mxu0
        %v483 = vadd.f32 %v347, %v482
        %v484 = vpop.f32.mrb[0].mxu0
        %485 = vdwg.mxu0
        %v486 = vmax.f32 %v456, 0.0
        %v487 = vmax.f32 %v459, 0.0
        %v488 = vmax.f32 %v464, 0.0
        %v489 = vmax.f32 %v467, 0.0
        %v490 = vmax.f32 %v472, 0.0
        %v491 = vmax.f32 %v475, 0.0
        %v492 = vmax.f32 %v480, 0.0
        %v493 = vmax.f32 %v483, 0.0
        %v494 = vld [vmem:[%s316] sm:$0xff]
        %v495 = vlaneseq
        %v496 = vshrl.u32 %v495, 7
        %v497 = vsub.s32 0, %v496
        %v498 = vrot.slane %v494, %v497
        %500 = vbcast.lane.b32.xlu0 %v498, 256
        %v501 = vpop.permute.xlu0 %500
        %v502 = vlaneseq
        %v503 = vshrl.u32 %v502, 7
        %v504 = vsub.s32 1, %v503
        %v505 = vrot.slane %v494, %v504
        %507 = vbcast.lane.b32.xlu0 %v505, 256
        %v508 = vpop.permute.xlu0 %507
        %v509 = vlaneseq
        %v510 = vshrl.u32 %v509, 7
        %v511 = vsub.s32 2, %v510
        %v512 = vrot.slane %v494, %v511
        %514 = vbcast.lane.b32.xlu0 %v512, 256
        %v515 = vpop.permute.xlu0 %514
        %v516 = vlaneseq
        %v517 = vshrl.u32 %v516, 7
        %v518 = vsub.s32 3, %v517
        %v519 = vrot.slane %v494, %v518
        %521 = vbcast.lane.b32.xlu0 %v519, 256
        %v522 = vpop.permute.xlu0 %521
        %v523 = vlaneseq
        %v524 = vshrl.u32 %v523, 7
        %v525 = vsub.s32 4, %v524
        %v526 = vrot.slane %v494, %v525
        %528 = vbcast.lane.b32.xlu0 %v526, 256
        %v529 = vpop.permute.xlu0 %528
        %v530 = vlaneseq
        %v531 = vshrl.u32 %v530, 7
        %v532 = vsub.s32 5, %v531
        %v533 = vrot.slane %v494, %v532
        %535 = vbcast.lane.b32.xlu0 %v533, 256
        %v536 = vpop.permute.xlu0 %535
        %v537 = vlaneseq
        %v538 = vshrl.u32 %v537, 7
        %v539 = vsub.s32 6, %v538
        %v540 = vrot.slane %v494, %v539
        %542 = vbcast.lane.b32.xlu0 %v540, 256
        %v543 = vpop.permute.xlu0 %542
        %v544 = vlaneseq
        %v545 = vshrl.u32 %v544, 7
        %v546 = vsub.s32 7, %v545
        %v547 = vrot.slane %v494, %v546
        %549 = vbcast.lane.b32.xlu0 %v547, 256
        %v550 = vpop.permute.xlu0 %549
        %v551 = vmul.f32 %v486, %v501
        %v552 = vmul.f32 %v487, %v508
        %v553 = vmul.f32 %v488, %v515
        %v554 = vmul.f32 %v489, %v522
        %v555 = vmul.f32 %v490, %v529
        %v556 = vmul.f32 %v491, %v536
        %v557 = vmul.f32 %v492, %v543
        %v558 = vmul.f32 %v493, %v550
        %v559 = vrot.slane %v551, 4
        %v560 = vadd.f32 %v551, %v559
        %v561 = vrot.slane %v560, 2
        %v562 = vadd.f32 %v560, %v561
        %v563 = vrot.slane %v562, 1
        %v564 = vadd.f32 %v562, %v563
        %v565 = vrot.slane %v552, 4
        %v566 = vadd.f32 %v552, %v565
        %v567 = vrot.slane %v566, 2
        %v568 = vadd.f32 %v566, %v567
        %v569 = vrot.slane %v568, 1
        %v570 = vadd.f32 %v568, %v569
        %v571 = vrot.slane %v553, 4
        %v572 = vadd.f32 %v553, %v571
        %v573 = vrot.slane %v572, 2
        %v574 = vadd.f32 %v572, %v573
        %v575 = vrot.slane %v574, 1
        %v576 = vadd.f32 %v574, %v575
        %v577 = vrot.slane %v554, 4
        %v578 = vadd.f32 %v554, %v577
        %v579 = vrot.slane %v578, 2
        %v580 = vadd.f32 %v578, %v579
        %v581 = vrot.slane %v580, 1
        %v582 = vadd.f32 %v580, %v581
        %v583 = vrot.slane %v555, 4
        %v584 = vadd.f32 %v555, %v583
        %v585 = vrot.slane %v584, 2
        %v586 = vadd.f32 %v584, %v585
        %v587 = vrot.slane %v586, 1
        %v588 = vadd.f32 %v586, %v587
        %v589 = vrot.slane %v556, 4
        %v590 = vadd.f32 %v556, %v589
        %v591 = vrot.slane %v590, 2
        %v592 = vadd.f32 %v590, %v591
        %v593 = vrot.slane %v592, 1
        %v594 = vadd.f32 %v592, %v593
        %v595 = vrot.slane %v557, 4
        %v596 = vadd.f32 %v557, %v595
        %v597 = vrot.slane %v596, 2
        %v598 = vadd.f32 %v596, %v597
        %v599 = vrot.slane %v598, 1
        %v600 = vadd.f32 %v598, %v599
        %v601 = vrot.slane %v558, 4
        %v602 = vadd.f32 %v558, %v601
        %v603 = vrot.slane %v602, 2
        %v604 = vadd.f32 %v602, %v603
        %v605 = vrot.slane %v604, 1
        %v606 = vadd.f32 %v604, %v605
        %vm607 = vcmask 64512
        %v608 = vsel %vm607, %v494, 0.0
        %609 = vadd.xlane.f32.xlu0 %v608
        %v610 = vpop.xlane.xlu0 %609
        %v611 = vmax.f32 %v610, 1e-06
        %v612 = vrcp.pop %v611
        %v614 = vrot.slane %v612, 1
        %v615 = vrot.slane %v612, 2
        %v616 = vrot.slane %v612, 3
        %v617 = vrot.slane %v612, 4
        %v618 = vrot.slane %v612, 5
        %v619 = vrot.slane %v612, 6
        %v620 = vrot.slane %v612, 7
        %v629 = vmul.f32 %v564, %v612
        %v630 = vmul.f32 %v570, %v614
        %v631 = vmul.f32 %v576, %v615
        %v632 = vmul.f32 %v582, %v616
        %v633 = vmul.f32 %v588, %v617
        %v634 = vmul.f32 %v594, %v618
        %v635 = vmul.f32 %v600, %v619
        %v636 = vmul.f32 %v606, %v620
        %v637 = vpack.c.bf16 %v629, %v629
        %v638 = vpack.c.bf16 %v630, %v630
        %v639 = vpack.c.bf16 %v631, %v631
        %v640 = vpack.c.bf16 %v632, %v632
        %v641 = vpack.c.bf16 %v633, %v633
        %v642 = vpack.c.bf16 %v634, %v634
        %v643 = vpack.c.bf16 %v635, %v635
        %v644 = vpack.c.bf16 %v636, %v636
        %v645 = vld [vmem:[#allocation7] sm:$0xf]
        %v646 = vld [vmem:[#allocation7 + $0x4] sm:$0xf]
        %v647 = vld [vmem:[#allocation7 + $0x8] sm:$0xf]
        %v648 = vld [vmem:[#allocation7 + $0xc] sm:$0xf]
        %v649 = vld [vmem:[#allocation7 + $0x10] sm:$0xf]
        %v650 = vld [vmem:[#allocation7 + $0x14] sm:$0xf]
        %v651 = vld [vmem:[#allocation7 + $0x18] sm:$0xf]
        %v652 = vld [vmem:[#allocation7 + $0x1c] sm:$0xf]
        %v653 = vld [vmem:[#allocation7 + $0x20] sm:$0xf]
        %v654 = vld [vmem:[#allocation7 + $0x24] sm:$0xf]
        %v655 = vld [vmem:[#allocation7 + $0x28] sm:$0xf]
        %v656 = vld [vmem:[#allocation7 + $0x2c] sm:$0xf]
        %v657 = vld [vmem:[#allocation7 + $0x30] sm:$0xf]
        %v658 = vld [vmem:[#allocation7 + $0x34] sm:$0xf]
        %v659 = vld [vmem:[#allocation7 + $0x38] sm:$0xf]
        %v660 = vld [vmem:[#allocation7 + $0x3c] sm:$0xf]
        %v661 = vld [vmem:[%s5] sm:$0x1]
        %v663 = vlaneseq
        %v664 = vshrl.u32 %v663, 7
        %v665 = vsub.s32 0, %v664
        %v666 = vrot.slane %v661, %v665
        %v676 = vunpack.c.l.b16 %v637
        %v677 = vunpack.c.l.b16 %v638
        %v678 = vunpack.c.l.b16 %v639
        %v679 = vunpack.c.l.b16 %v640
        %v680 = vunpack.c.l.b16 %v641
        %v681 = vunpack.c.l.b16 %v642
        %v682 = vunpack.c.l.b16 %v643
        %v683 = vunpack.c.l.b16 %v644
        %v684 = vrot.slane %v677, 7
        %vm685 = vcmask 1041409
        %v686 = vsel %vm685, %v684, %v676
        %v687 = vrot.slane %v678, 6
        %vm688 = vcmask 1042434
        %v689 = vsel %vm688, %v687, %v686
        %v690 = vrot.slane %v679, 5
        %vm691 = vcmask 1043459
        %v692 = vsel %vm691, %v690, %v689
        %v693 = vrot.slane %v680, 4
        %vm694 = vcmask 1044484
        %v695 = vsel %vm694, %v693, %v692
        %v696 = vrot.slane %v681, 3
        %vm697 = vcmask 1045509
        %v698 = vsel %vm697, %v696, %v695
        %v699 = vrot.slane %v682, 2
        %vm700 = vcmask 1046534
        %v701 = vsel %vm700, %v699, %v698
        %v702 = vrot.slane %v683, 1
        %vm703 = vcmask 1047559
        %v704 = vsel %vm703, %v702, %v701
        %v705 = vpack.c.b16 %v704, %v704
        %v723 = vunpack.c.l.b16 %v645
        %v724 = vunpack.c.l.b16 %v646
        %v725 = vunpack.c.l.b16 %v647
        %v726 = vunpack.c.l.b16 %v648
        %v727 = vunpack.c.l.b16 %v649
        %v728 = vunpack.c.l.b16 %v650
        %v729 = vunpack.c.l.b16 %v651
        %v730 = vunpack.c.l.b16 %v652
        %v731 = vunpack.c.l.b16 %v653
        %v732 = vunpack.c.l.b16 %v654
        %v733 = vunpack.c.l.b16 %v655
        %v734 = vunpack.c.l.b16 %v656
        %v735 = vunpack.c.l.b16 %v657
        %v736 = vunpack.c.l.b16 %v658
        %v737 = vunpack.c.l.b16 %v659
        %v738 = vunpack.c.l.b16 %v660
        %v739 = vpack.c.b16 %v724, %v723
        %v740 = vpack.c.b16 %v726, %v725
        %v741 = vpack.c.b16 %v728, %v727
        %v742 = vpack.c.b16 %v730, %v729
        %v743 = vpack.c.b16 %v732, %v731
        %v744 = vpack.c.b16 %v734, %v733
        %v745 = vpack.c.b16 %v736, %v735
        %v746 = vpack.c.b16 %v738, %v737
        %755 = vmatprep.subr.bf16.mxu0 0
        %756 = vmatpush1.bf16.msra.mxu0 %v739
        %757 = vmatprep.subr.bf16.mxu0 0
        %758 = vmatpush1.bf16.msra.mxu0 %v740
        %759 = vmatprep.subr.bf16.mxu0 0
        %760 = vmatpush1.bf16.msra.mxu0 %v741
        %761 = vmatprep.subr.bf16.mxu0 0
        %762 = vmatpush1.bf16.msra.mxu0 %v742
        %763 = vmatprep.subr.bf16.mxu0 0
        %764 = vmatpush1.bf16.msra.mxu0 %v743
        %765 = vmatprep.subr.bf16.mxu0 0
        %766 = vmatpush1.bf16.msra.mxu0 %v744
        %767 = vmatprep.subr.bf16.mxu0 0
        %768 = vmatpush1.bf16.msra.mxu0 %v745
        %769 = vmatprep.subr.bf16.mxu0 0
        %770 = vmatpush1.bf16.msra.mxu0 %v746
        %771 = vmatprep.subr.bf16.mxu0 0
        %772 = vmatpush1.bf16.msra.mxu0 0
        %773 = vmatprep.subr.bf16.mxu0 0
        %774 = vmatpush1.bf16.msra.mxu0 0
        %775 = vmatprep.subr.bf16.mxu0 0
        %776 = vmatpush1.bf16.msra.mxu0 0
        %777 = vmatprep.subr.bf16.mxu0 0
        %778 = vmatpush1.bf16.msra.mxu0 0
        %779 = vmatprep.subr.bf16.mxu0 0
        %780 = vmatpush1.bf16.msra.mxu0 0
        %781 = vmatprep.subr.bf16.mxu0 0
        %782 = vmatpush1.bf16.msra.mxu0 0
        %783 = vmatprep.subr.bf16.mxu0 0
        %784 = vmatpush1.bf16.msra.mxu0 0
        %785 = vmatprep.subr.bf16.mxu0 0
        %786 = vmatpush1.bf16.msra.mxu0 0
        %787 = vmatprep.mubr.bf16.mxu0 0
        %788 = vmatmul.mubr.bf16.gmra.mrb[0].mxu0 %v705
        %v789 = vpop.f32.mrb[0].mxu0
        %v790 = vadd.f32 %v666, %v789
        %v791 = vpop.f32.mrb[0].mxu0
        %v792 = vpop.f32.mrb[0].mxu0
        %v793 = vpop.f32.mrb[0].mxu0
        %794 = vdwg.mxu0
        %v795 = vmax.f32 %v790, 0.0
        %796 = vst [vmem:[%s311] sm:$0xff] %v795
        %s797 = sand.u32 %s168, 1
        %s798 = scalar_lea.sflag [#allocation4], %s797
        %s799 = sand.u32 %s168, 1
        %s800 = smul.addr %s799, 8
        %s801 = scalar_lea.vmem [#allocation8], %s800
        // Predicated region
        $region57: #{tpu_custom_call.1} parent=43 // pred_check
          %p802 = pneg %p178
        $region58: #{tpu_custom_call.1} parent=43 // pred_check_branch
          %804 = sbr.rel (%p802) target = $region60
        $region59: #{tpu_custom_call.1} parent=43 // pred_region
          %s806 = ssub.s32 128, 128
          %807 = vsyncadd %s798, %s806
          %s808 = smul.addr %s24, 128
          %s809 = scalar_lea.hbm %s6, %s808
          %s811 = sshll.u32 %s801, 4
          %s812 = int_to_ptr.vmem [resolvable:$true] %s811
          %814 = dma.vmem_to_hbm [thread:$0]  %s812, 128, %s809, %s798
        $region60: #{tpu_custom_call.1} parent=43 // pred_fallthru
          _
      $region44: #{tpu_custom_call.1} parent=5 // pred_fallthru
        _
      %p815 = scmp.le.s32.totalorder 2, %s19
      // Predicated region
      $region61: #{tpu_custom_call.1} parent=5 // pred_check
        %p816 = pneg %p815
      $region62: #{tpu_custom_call.1} parent=5 // pred_check_branch
        %818 = sbr.rel (%p816) target = $region64
      $region63: #{tpu_custom_call.1} parent=5 // pred_region
        %s819 = ssub.s32 %s19, 2
        // Predicated region
        $region65: #{tpu_custom_call.1} parent=63 // pred_check
          %p820 = pneg %p184
        $region66: #{tpu_custom_call.1} parent=63 // pred_check_branch
          %822 = sbr.rel (%p820) target = $region68
        $region67: #{tpu_custom_call.1} parent=63 // pred_region
          %s823 = sand.u32 %s169, 1
          %s824 = scalar_lea.sflag [#allocation4], %s823
          %s825 = sand.u32 %s169, 1
          %s826 = smul.addr %s825, 8
          %s827 = scalar_lea.vmem [#allocation8], %s826
          %828 = dma.done %s824, 128
        $region68: #{tpu_custom_call.1} parent=63 // pred_fallthru
          _
      $region64: #{tpu_custom_call.1} parent=5 // pred_fallthru
        _
    $region6: #{tpu_custom_call.1} parent=1 // loop_footer
      %s23 = sadd.s32 1, %s19
    $region7: #{tpu_custom_call.1} parent=1 // loop_footer_branch
      %18 = sbr.rel target = $region3
    $region8: #{tpu_custom_call.1} parent=1 // loop_exit
      _
    %829 = vsyncpa [#allocation3], 1
    %s830 = scalar_lea.sflag [#allocation3], 1
    %831 = vsyncpa %s830, 1
    %832 = vsyncpa [#allocation6], 1
    %833 = vsyncpa [#allocation4], 1
    %s834 = scalar_lea.sflag [#allocation4], 1
    %835 = vsyncpa %s834, 1

</llo_original>
